<compile_context>
chip_gen: v7x
topology: tpu7x:2x2x1
jax: 0.10.0
libtpu: 0.0.40
codegen_flags: <defaults>
</compile_context>

<pallas_src>
import jax
import jax.numpy as jnp
from jax import lax
from jax.experimental import pallas as pl
from jax.experimental.pallas import tpu as pltpu

IN_DIM = 10
HIDDEN = 20
OUT_DIM = 1


def mlp_kernel(x_ref, w1_ref, b1_ref, w2_ref, b2_ref, o_ref):
    # x_ref : (TB, IN_DIM)      natural input layout (no wrapper transpose)
    # w1_ref: (HIDDEN, IN_DIM)  PyTorch fc1.weight layout
    # b1_ref: (HIDDEN, 1)
    # w2_ref: (OUT_DIM, HIDDEN) PyTorch fc2.weight layout
    # b2_ref: (OUT_DIM, 1)
    # o_ref : (OUT_DIM, TB)     lane-dense transposed output tile
    x = x_ref[...]

    # h^T = relu(W1 @ x^T + b1): contract the last axis of both operands
    # ("nt" matmul) so the batch dim lands on lanes without materializing a
    # transposed copy of the x tile in VMEM.
    ht = lax.dot_general(
        w1_ref[...], x,
        dimension_numbers=(((1,), (1,)), ((), ())),
        preferred_element_type=jnp.float32)              # (HIDDEN, TB)
    ht = jnp.maximum(ht + b1_ref[...], 0.0)

    # y^T = W2 @ h^T + b2                                -> (OUT_DIM, TB)
    yt = jnp.dot(w2_ref[...], ht, preferred_element_type=jnp.float32)
    o_ref[...] = (yt + b2_ref[...]).astype(o_ref.dtype)


def _round_up(n, m):
    return pl.cdiv(n, m) * m


def my_bce_model_forward(x, w1, b1, w2, b2, *, tb=8192):
    """Forward pass of MyBCEModel (raw logits; the module applies no sigmoid).

    x  : (B, IN_DIM) float32, consumed in natural layout (no transpose/pad)
    w1 : (HIDDEN, IN_DIM)  b1 : (HIDDEN,)    -- PyTorch fc1 layout
    w2 : (OUT_DIM, HIDDEN) b2 : (OUT_DIM,)   -- PyTorch fc2 layout
    tb : max batch-tile size (rounded to a multiple of 128 when tiling).
    Returns (B, OUT_DIM) float32 logits.
    """
    B = x.shape[0]

    if B <= 256:
        # Tiny batch: one tile (block == full array dims is always legal).
        TB = B
        num_tiles = 1
    else:
        # At least 2 tiles so the "parallel" grid axis can shard across both
        # v7x TensorCores; TB multiple of 128 keeps the (1, TB) output
        # lane-dense and the (TB, 10) input sublane-aligned.
        TB = min(_round_up(tb, 128), _round_up(pl.cdiv(B, 2), 128))
        num_tiles = pl.cdiv(B, TB)   # last block may be partial (masked stores)

    b1c = b1.reshape(HIDDEN, 1)
    b2c = b2.reshape(OUT_DIM, 1)

    param_bytes = (IN_DIM * HIDDEN + HIDDEN + HIDDEN * OUT_DIM + OUT_DIM) * 4
    cost = pl.CostEstimate(
        flops=2 * B * (IN_DIM * HIDDEN + HIDDEN * OUT_DIM),
        transcendentals=0,
        bytes_accessed=B * (IN_DIM + OUT_DIM) * 4 + param_bytes,
    )

    out_t = pl.pallas_call(
        mlp_kernel,
        out_shape=jax.ShapeDtypeStruct((OUT_DIM, B), jnp.float32),
        grid=(num_tiles,),
        in_specs=[
            pl.BlockSpec((TB, IN_DIM), lambda i: (i, 0)),        # x tile
            pl.BlockSpec((HIDDEN, IN_DIM), lambda i: (0, 0)),    # W1 (resident)
            pl.BlockSpec((HIDDEN, 1), lambda i: (0, 0)),         # b1 (resident)
            pl.BlockSpec((OUT_DIM, HIDDEN), lambda i: (0, 0)),   # W2 (resident)
            pl.BlockSpec((OUT_DIM, 1), lambda i: (0, 0)),        # b2 (resident)
        ],
        out_specs=pl.BlockSpec((OUT_DIM, TB), lambda i: (0, i)), # lane-dense
        compiler_params=pltpu.CompilerParams(
            dimension_semantics=("parallel",),
            vmem_limit_bytes=32 * 1024 * 1024),
        cost_estimate=cost,
    )(x, w1, b1c, w2, b2c)

    # Tiny (1, B) -> (B, 1) flip; negligible next to the kernel's HBM traffic.
    return out_t.T


def init_params(key):
    # Mimic nn.Linear's uniform(-1/sqrt(fan_in), 1/sqrt(fan_in)) init,
    # stored in PyTorch layout: weight (out_features, in_features).
    k1, k2, k3, k4 = jax.random.split(key, 4)
    bound1 = 1.0 / (IN_DIM ** 0.5)
    bound2 = 1.0 / (HIDDEN ** 0.5)
    w1 = jax.random.uniform(k1, (HIDDEN, IN_DIM), jnp.float32, -bound1, bound1)
    b1 = jax.random.uniform(k2, (HIDDEN,), jnp.float32, -bound1, bound1)
    w2 = jax.random.uniform(k3, (OUT_DIM, HIDDEN), jnp.float32, -bound2, bound2)
    b2 = jax.random.uniform(k4, (OUT_DIM,), jnp.float32, -bound2, bound2)
    return w1, b1, w2, b2


def reference_forward(x, w1, b1, w2, b2):
    # Plain-JAX reference matching the PyTorch module exactly.
    h = jnp.maximum(x @ w1.T + b1, 0.0)
    return h @ w2.T + b2


if __name__ == "__main__":
    root = jax.random.PRNGKey(0)
    k_x, k_x2, k_p = jax.random.split(root, 3)
    w1, b1, w2, b2 = init_params(k_p)

    # Case 1: tiny batch (single-tile path, block == full dims).
    B1 = 8
    x1 = jax.random.normal(k_x, (B1, IN_DIM), jnp.float32)
    out1 = jax.block_until_ready(my_bce_model_forward(x1, w1, b1, w2, b2))
    ref1 = reference_forward(x1, w1, b1, w2, b2)
    assert out1.shape == (B1, OUT_DIM)
    assert jnp.allclose(out1, ref1, atol=1e-5, rtol=1e-5)

    # Case 2: tiled path with 2 "parallel" tiles of 256 and a partial last
    # block (300 % 256 != 0) -> exercises masked tail stores, no input pad.
    B2 = 300
    x2 = jax.random.normal(k_x2, (B2, IN_DIM), jnp.float32)
    out2 = jax.block_until_ready(my_bce_model_forward(x2, w1, b1, w2, b2))
    ref2 = reference_forward(x2, w1, b1, w2, b2)
    assert out2.shape == (B2, OUT_DIM)
    assert jnp.allclose(out2, ref2, atol=1e-5, rtol=1e-5)
    assert bool(jnp.isfinite(out2).all())

    # TODO(synk): module name mentions BCE but forward() returns raw logits
    # (no sigmoid / loss), so the kernel intentionally stops at fc2 output.
    print("KERNEL_OK")
</pallas_src>

<mosaic_0001>
module attributes {stable_mosaic.version = 11 : i64} {
  func.func @mlp_kernel(%arg0: i32, %arg1: memref<8x10xf32, #tpu.memory_space<vmem>>, %arg2: memref<20x10xf32, #tpu.memory_space<vmem>>, %arg3: memref<20x1xf32, #tpu.memory_space<vmem>>, %arg4: memref<1x20xf32, #tpu.memory_space<vmem>>, %arg5: memref<1x1xf32, #tpu.memory_space<vmem>>, %arg6: memref<1x8xf32, #tpu.memory_space<vmem>>) attributes {dimension_semantics = [#tpu.dimension_semantics<parallel>], iteration_bounds = array<i64: 1>, scalar_prefetch = 0 : i64, scratch_operands = 0 : i64, tpu.core_type = #tpu.core_type<tc>, window_params = [{transform_indices = @transform_0, window_bounds = array<i64: 8, 10>}, {pipeline_mode = #tpu.pipeline_mode<synchronous>, transform_indices = @transform_1, window_bounds = array<i64: 20, 10>}, {pipeline_mode = #tpu.pipeline_mode<synchronous>, transform_indices = @transform_2, window_bounds = array<i64: 20, 1>}, {pipeline_mode = #tpu.pipeline_mode<synchronous>, transform_indices = @transform_3, window_bounds = array<i64: 1, 20>}, {pipeline_mode = #tpu.pipeline_mode<synchronous>, transform_indices = @transform_4, window_bounds = array<i64: 1, 1>}, {transform_indices = @transform_5, window_bounds = array<i64: 1, 8>}]} {
    %c0 = arith.constant 0 : index
    %c0_0 = arith.constant 0 : index
    %0 = vector.load %arg1[%c0, %c0_0] : memref<8x10xf32, #tpu.memory_space<vmem>>, vector<8x10xf32>
    %c0_1 = arith.constant 0 : index
    %c0_2 = arith.constant 0 : index
    %1 = vector.load %arg2[%c0_1, %c0_2] : memref<20x10xf32, #tpu.memory_space<vmem>>, vector<20x10xf32>
    %cst = arith.constant dense<0.000000e+00> : vector<20x8xf32>
    %2 = tpu.matmul %1, %0, %cst {dimension_numbers = #tpu.dot_dimension_numbers<[1], [1], [0], [0], [0, 0, 1, 0], [], []>} : vector<20x10xf32>, vector<8x10xf32>, vector<20x8xf32> -> vector<20x8xf32>
    %c0_3 = arith.constant 0 : index
    %c0_4 = arith.constant 0 : index
    %3 = vector.load %arg3[%c0_3, %c0_4] : memref<20x1xf32, #tpu.memory_space<vmem>>, vector<20x1xf32>
    %4 = vector.broadcast %3 : vector<20x1xf32> to vector<20x8xf32>
    %5 = arith.addf %2, %4 : vector<20x8xf32>
    %cst_5 = arith.constant 0.000000e+00 : f32
    %6 = vector.broadcast %cst_5 : f32 to vector<20x8xf32>
    %7 = arith.maximumf %5, %6 : vector<20x8xf32>
    %c0_6 = arith.constant 0 : index
    %c0_7 = arith.constant 0 : index
    %8 = vector.load %arg4[%c0_6, %c0_7] : memref<1x20xf32, #tpu.memory_space<vmem>>, vector<1x20xf32>
    %cst_8 = arith.constant dense<0.000000e+00> : vector<1x8xf32>
    %9 = tpu.matmul %8, %7, %cst_8 {dimension_numbers = #tpu.dot_dimension_numbers<[1], [0], [0], [1], [0, 0, 1, 1], [], []>} : vector<1x20xf32>, vector<20x8xf32>, vector<1x8xf32> -> vector<1x8xf32>
    %c0_9 = arith.constant 0 : index
    %c0_10 = arith.constant 0 : index
    %10 = vector.load %arg5[%c0_9, %c0_10] : memref<1x1xf32, #tpu.memory_space<vmem>>, vector<1x1xf32>
    %11 = vector.broadcast %10 : vector<1x1xf32> to vector<1x8xf32>
    %12 = arith.addf %9, %11 : vector<1x8xf32>
    %c0_11 = arith.constant 0 : index
    %c0_12 = arith.constant 0 : index
    %13 = vector.load %arg6[%c0_11, %c0_12] : memref<1x8xf32, #tpu.memory_space<vmem>>, vector<1x8xf32>
    tpu.vector_store %arg6[%c0_11, %c0_12], %12 {strides = array<i32>} : memref<1x8xf32, #tpu.memory_space<vmem>>, vector<1x8xf32>,
    return
  }
  func.func @transform_0(%arg0: i32) -> (i32, i32) {
    %c0_i32 = arith.constant 0 : i32
    %c0_i32_0 = arith.constant 0 : i32
    return %arg0, %c0_i32 : i32, i32
  }
  func.func @transform_1(%arg0: i32) -> (i32, i32) {
    %c0_i32 = arith.constant 0 : i32
    %c0_i32_0 = arith.constant 0 : i32
    %c0_i32_1 = arith.constant 0 : i32
    return %c0_i32, %c0_i32_0 : i32, i32
  }
  func.func @transform_2(%arg0: i32) -> (i32, i32) {
    %c0_i32 = arith.constant 0 : i32
    %c0_i32_0 = arith.constant 0 : i32
    %c0_i32_1 = arith.constant 0 : i32
    return %c0_i32, %c0_i32_0 : i32, i32
  }
  func.func @transform_3(%arg0: i32) -> (i32, i32) {
    %c0_i32 = arith.constant 0 : i32
    %c0_i32_0 = arith.constant 0 : i32
    %c0_i32_1 = arith.constant 0 : i32
    return %c0_i32, %c0_i32_0 : i32, i32
  }
  func.func @transform_4(%arg0: i32) -> (i32, i32) {
    %c0_i32 = arith.constant 0 : i32
    %c0_i32_0 = arith.constant 0 : i32
    %c0_i32_1 = arith.constant 0 : i32
    return %c0_i32, %c0_i32_0 : i32, i32
  }
  func.func @transform_5(%arg0: i32) -> (i32, i32) {
    %c0_i32 = arith.constant 0 : i32
    %c0_i32_0 = arith.constant 0 : i32
    return %c0_i32, %arg0 : i32, i32
  }
}

</mosaic_0001>

<llo_original>
// kernel: tpu_custom_call.1
$region0: #{tpu_custom_call.1}
  #allocation0 [shape = 'u32[]', space=smem, size = 0x4, offset = 0x4, fixed_abs, tag = 'smem constant byte address 0x4 - core index']
  #allocation1 [shape = 'u32[144,128]{1,0:T(1,128)}', space=vmem, size = 0x12000, scoped, tag = 'internal scratch']
  #allocation2 [shape = 'f32[1,1]{1,0:T(1,128)S(1)}', space=vmem, size = 0x200, scoped, tag = 'scoped memory for tpu_custom_call.1']
  %s0 = inlined_call_operand.vmem [shape: f32[8,10], index: 0, kind: input, shape index: {}]
  %s1 = inlined_call_operand.vmem [shape: f32[20,10], index: 1, kind: input, shape index: {}]
  %s2 = inlined_call_operand.vmem [shape: f32[20,1], index: 2, kind: input, shape index: {}]
  %s3 = inlined_call_operand.vmem [shape: f32[1,20], index: 3, kind: input, shape index: {}]
  %s4 = inlined_call_operand.<no memory space> [shape: f32[1,1], index: 4, kind: input, shape index: {}]
  %s5 = inlined_call_operand.hbm [shape: f32[1,8], index: 5, kind: output, shape index: {}]
  %s6 = sld [smem:[#allocation0]]
  $region30: #{tpu_custom_call.1} parent=0
    _
  %s8 = ssub.s32 1, %s6
  %s9 = scalar_select 0, %s8, %s6
  %v10 = vstv %s4
  %11 = vst [vmem:[#allocation2] sm:$0x1] %v10
  $region1: #{tpu_custom_call.1} parent=0
    #allocation3 [shape = 'u8[512]{0}', space=vmem, size = 0x400, scoped, tag = 'output window, operand 0, single buffered']
    #allocation4 [shape = 's32[1]{0}', space=sflag, size = 0x4, scoped, tag = 'scoped memory for tpu_custom_call.1']
    %12 = vsyncpa [#allocation4], 0
    // Predicated region
    $region2: #{tpu_custom_call.1} parent=1 // pred_check
      _
    $region3: #{tpu_custom_call.1} parent=1 // pred_check_branch
      %14 = sbr.rel (0) target = $region5
    $region4: #{tpu_custom_call.1} parent=1 // pred_region
      _
    $region5: #{tpu_custom_call.1} parent=1 // pred_fallthru
      _
    // Predicated region
    $region6: #{tpu_custom_call.1} parent=1 // pred_check
      _
    $region7: #{tpu_custom_call.1} parent=1 // pred_check_branch
      %16 = sbr.rel (0) target = $region9
    $region8: #{tpu_custom_call.1} parent=1 // pred_region
      _
    $region9: #{tpu_custom_call.1} parent=1 // pred_fallthru
      _
    // Predicated region
    $region10: #{tpu_custom_call.1} parent=1 // pred_check
      _
    $region11: #{tpu_custom_call.1} parent=1 // pred_check_branch
      %18 = sbr.rel (0) target = $region13
    $region12: #{tpu_custom_call.1} parent=1 // pred_region
      _
    $region13: #{tpu_custom_call.1} parent=1 // pred_fallthru
      _
    // Predicated region
    $region14: #{tpu_custom_call.1} parent=1 // pred_check
      _
    $region15: #{tpu_custom_call.1} parent=1 // pred_check_branch
      %20 = sbr.rel (0) target = $region17
    $region16: #{tpu_custom_call.1} parent=1 // pred_region
      _
    $region17: #{tpu_custom_call.1} parent=1 // pred_fallthru
      _
    // Predicated region
    $region18: #{tpu_custom_call.1} parent=1 // pred_check
      _
    $region19: #{tpu_custom_call.1} parent=1 // pred_check_branch
      %22 = sbr.rel (0) target = $region21
    $region20: #{tpu_custom_call.1} parent=1 // pred_region
      _
    $region21: #{tpu_custom_call.1} parent=1 // pred_fallthru
      _
    %v23 = vld [vmem:[%s0] sm:$0xff]
    %v24 = vld [vmem:[%s1] sm:$0xff]
    %v25 = vld [vmem:[%s1 + $0x8] sm:$0xff]
    %v26 = vld [vmem:[%s1 + $0x10] sm:$0xf]
    %v27 = vld [vmem:[%s2] sm:$0xff]
    %v28 = vld [vmem:[%s2 + $0x8] sm:$0xff]
    %v29 = vld [vmem:[%s2 + $0x10] sm:$0xf]
    %31 = vset.pattern.permute.xlu0 0
    %32 = vperm.xlu0 %31, %v27
    %v33 = vpop.permute.xlu0 %32
    %36 = vset.pattern.permute.xlu0 0
    %37 = vperm.xlu0 %36, %v28
    %v38 = vpop.permute.xlu0 %37
    %41 = vset.pattern.permute.xlu0 0
    %42 = vperm.xlu0 %41, %v29
    %v43 = vpop.permute.xlu0 %42
    %vm45 = vcmask 80896
    %v47 = vsel %vm45, %v24, 0
    %v50 = vsel %vm45, %v25, 0
    %v53 = vsel %vm45, %v26, 0
    %v56 = vsel %vm45, %v23, 0
    %58 = vmatprep.subr.mxu0 0.0
    %59 = vmatpush1.xpose.msra.mxu0 %v56
    %60 = vmatprep.subr.mxu0 0.0
    %61 = vmatpush1.xpose.msra.mxu0 0.0
    %62 = vmatprep.subr.mxu0 0.0
    %63 = vmatpush1.xpose.msra.mxu0 0.0
    %64 = vmatprep.subr.mxu0 0.0
    %65 = vmatpush1.xpose.msra.mxu0 0.0
    %66 = vmatprep.subr.mxu0 0.0
    %67 = vmatpush1.xpose.msra.mxu0 0.0
    %68 = vmatprep.subr.mxu0 0.0
    %69 = vmatpush1.xpose.msra.mxu0 0.0
    %70 = vmatprep.subr.mxu0 0.0
    %71 = vmatpush1.xpose.msra.mxu0 0.0
    %72 = vmatprep.subr.mxu0 0.0
    %73 = vmatpush1.xpose.msra.mxu0 0.0
    %74 = vmatprep.subr.mxu0 0.0
    %75 = vmatpush1.xpose.msra.mxu0 0.0
    %76 = vmatprep.subr.mxu0 0.0
    %77 = vmatpush1.xpose.msra.mxu0 0.0
    %78 = vmatprep.subr.mxu0 0.0
    %79 = vmatpush1.xpose.msra.mxu0 0.0
    %80 = vmatprep.subr.mxu0 0.0
    %81 = vmatpush1.xpose.msra.mxu0 0.0
    %82 = vmatprep.subr.mxu0 0.0
    %83 = vmatpush1.xpose.msra.mxu0 0.0
    %84 = vmatprep.subr.mxu0 0.0
    %85 = vmatpush1.xpose.msra.mxu0 0.0
    %86 = vmatprep.subr.mxu0 0.0
    %87 = vmatpush1.xpose.msra.mxu0 0.0
    %88 = vmatprep.subr.mxu0 0.0
    %89 = vmatpush1.xpose.msra.mxu0 0.0
    %90 = vmatprep.subr.mxu0 0.0
    %91 = vmatpush1.xpose.msra.mxu0 0.0
    %92 = vmatprep.subr.mxu0 0.0
    %93 = vmatpush1.xpose.msra.mxu0 0.0
    %94 = vmatprep.subr.mxu0 0.0
    %95 = vmatpush1.xpose.msra.mxu0 0.0
    %96 = vmatprep.subr.mxu0 0.0
    %97 = vmatpush1.xpose.msra.mxu0 0.0
    %98 = vmatprep.subr.mxu0 0.0
    %99 = vmatpush1.xpose.msra.mxu0 0.0
    %100 = vmatprep.subr.mxu0 0.0
    %101 = vmatpush1.xpose.msra.mxu0 0.0
    %102 = vmatprep.subr.mxu0 0.0
    %103 = vmatpush1.xpose.msra.mxu0 0.0
    %104 = vmatprep.subr.mxu0 0.0
    %105 = vmatpush1.xpose.msra.mxu0 0.0
    %106 = vmatprep.subr.mxu0 0.0
    %107 = vmatpush1.xpose.msra.mxu0 0.0
    %108 = vmatprep.subr.mxu0 0.0
    %109 = vmatpush1.xpose.msra.mxu0 0.0
    %110 = vmatprep.subr.mxu0 0.0
    %111 = vmatpush1.xpose.msra.mxu0 0.0
    %112 = vmatprep.subr.mxu0 0.0
    %113 = vmatpush1.xpose.msra.mxu0 0.0
    %114 = vmatprep.subr.mxu0 0.0
    %115 = vmatpush1.xpose.msra.mxu0 0.0
    %116 = vmatprep.subr.mxu0 0.0
    %117 = vmatpush1.xpose.msra.mxu0 0.0
    %118 = vmatprep.subr.mxu0 0.0
    %119 = vmatpush1.xpose.msra.mxu0 0.0
    %120 = vmatprep.subr.mxu0 0.0
    %121 = vmatpush1.xpose.msra.mxu0 0.0
    %122 = vmatprep.mubr.f32.mxu0 0.0
    %123 = vmatmul.mubr.f32.gmra.mrb[0].mxu0 %v47
    %v124 = vpop.f32.mrb[0].mxu0
    %v125 = vadd.f32 %v33, %v124
    %v126 = vpop.f32.mrb[0].mxu0
    %127 = vmatprep.mubr.f32.mxu0 0.0
    %128 = vmatmul.mubr.f32.gmra.mrb[0].mxu0 %v50
    %v129 = vpop.f32.mrb[0].mxu0
    %v130 = vadd.f32 %v38, %v129
    %v131 = vpop.f32.mrb[0].mxu0
    %132 = vmatprep.mubr.f32.mxu0 0.0
    %133 = vmatmul.mubr.f32.gmra.mrb[0].mxu0 %v53
    %v134 = vpop.f32.mrb[0].mxu0
    %v135 = vadd.f32 %v43, %v134
    %v136 = vpop.f32.mrb[0].mxu0
    %137 = vdwg.mxu0
    %v138 = vmax.f32 %v125, 0.0
    %v139 = vmax.f32 %v130, 0.0
    %v140 = vmax.f32 %v135, 0.0
    %v141 = vld [vmem:[%s3] sm:$0x1]
    %v142 = vld [vmem:[#allocation2] sm:$0x1]
    %144 = vset.pattern.permute.xlu0 0
    %145 = vperm.xlu0 %144, %v142
    %v146 = vpop.permute.xlu0 %145
    %v148 = vlaneseq
    %v149 = vshrl.u32 %v148, 7
    %v150 = vsub.s32 0, %v149
    %v151 = vrot.slane %v146, %v150
    %vm152 = vcmask 162816
    %v154 = vsel %vm152, %v141, 0
    %vm156 = vcmask 1043456
    %v158 = vsel %vm156, %v140, 0
    %160 = vmatprep.subr.mxu0 0.0
    %161 = vmatpush1.msra.mxu0 %v138
    %162 = vmatprep.subr.mxu0 0.0
    %163 = vmatpush1.msra.mxu0 %v139
    %164 = vmatprep.subr.mxu0 0.0
    %165 = vmatpush1.msra.mxu0 %v158
    %166 = vmatprep.subr.mxu0 0.0
    %167 = vmatpush1.msra.mxu0 0.0
    %168 = vmatprep.subr.mxu0 0.0
    %169 = vmatpush1.msra.mxu0 0.0
    %170 = vmatprep.subr.mxu0 0.0
    %171 = vmatpush1.msra.mxu0 0.0
    %172 = vmatprep.subr.mxu0 0.0
    %173 = vmatpush1.msra.mxu0 0.0
    %174 = vmatprep.subr.mxu0 0.0
    %175 = vmatpush1.msra.mxu0 0.0
    %176 = vmatprep.subr.mxu0 0.0
    %177 = vmatpush1.msra.mxu0 0.0
    %178 = vmatprep.subr.mxu0 0.0
    %179 = vmatpush1.msra.mxu0 0.0
    %180 = vmatprep.subr.mxu0 0.0
    %181 = vmatpush1.msra.mxu0 0.0
    %182 = vmatprep.subr.mxu0 0.0
    %183 = vmatpush1.msra.mxu0 0.0
    %184 = vmatprep.subr.mxu0 0.0
    %185 = vmatpush1.msra.mxu0 0.0
    %186 = vmatprep.subr.mxu0 0.0
    %187 = vmatpush1.msra.mxu0 0.0
    %188 = vmatprep.subr.mxu0 0.0
    %189 = vmatpush1.msra.mxu0 0.0
    %190 = vmatprep.subr.mxu0 0.0
    %191 = vmatpush1.msra.mxu0 0.0
    %192 = vmatprep.subr.mxu0 0.0
    %193 = vmatpush1.msra.mxu0 0.0
    %194 = vmatprep.subr.mxu0 0.0
    %195 = vmatpush1.msra.mxu0 0.0
    %196 = vmatprep.subr.mxu0 0.0
    %197 = vmatpush1.msra.mxu0 0.0
    %198 = vmatprep.subr.mxu0 0.0
    %199 = vmatpush1.msra.mxu0 0.0
    %200 = vmatprep.subr.mxu0 0.0
    %201 = vmatpush1.msra.mxu0 0.0
    %202 = vmatprep.subr.mxu0 0.0
    %203 = vmatpush1.msra.mxu0 0.0
    %204 = vmatprep.subr.mxu0 0.0
    %205 = vmatpush1.msra.mxu0 0.0
    %206 = vmatprep.subr.mxu0 0.0
    %207 = vmatpush1.msra.mxu0 0.0
    %208 = vmatprep.subr.mxu0 0.0
    %209 = vmatpush1.msra.mxu0 0.0
    %210 = vmatprep.subr.mxu0 0.0
    %211 = vmatpush1.msra.mxu0 0.0
    %212 = vmatprep.subr.mxu0 0.0
    %213 = vmatpush1.msra.mxu0 0.0
    %214 = vmatprep.subr.mxu0 0.0
    %215 = vmatpush1.msra.mxu0 0.0
    %216 = vmatprep.subr.mxu0 0.0
    %217 = vmatpush1.msra.mxu0 0.0
    %218 = vmatprep.subr.mxu0 0.0
    %219 = vmatpush1.msra.mxu0 0.0
    %220 = vmatprep.subr.mxu0 0.0
    %221 = vmatpush1.msra.mxu0 0.0
    %222 = vmatprep.subr.mxu0 0.0
    %223 = vmatpush1.msra.mxu0 0.0
    %224 = vmatprep.mubr.f32.mxu0 0.0
    %225 = vmatmul.mubr.f32.gmra.mrb[0].mxu0 %v154
    %v226 = vpop.f32.mrb[0].mxu0
    %v227 = vadd.f32 %v151, %v226
    %v228 = vpop.f32.mrb[0].mxu0
    %229 = vdwg.mxu0
    %vm230 = vcmask 57344
    %231 = vst.msk [vmem:[#allocation3] sm:$0x1] %vm230, %v227
    // Predicated region
    $region22: #{tpu_custom_call.1} parent=1 // pred_check
      _
    $region23: #{tpu_custom_call.1} parent=1 // pred_check_branch
      %233 = sbr.rel (0) target = $region25
    $region24: #{tpu_custom_call.1} parent=1 // pred_region
      %s235 = ssub.s32 16, 16
      %236 = vsyncadd [#allocation4], %s235
      %s238 = sshll.u32 [#allocation3], 4
      %s239 = int_to_ptr.vmem [resolvable:$true] %s238
      %241 = dma.vmem_to_hbm [thread:$0]  %s239, 16, %s5, [#allocation4]
    $region25: #{tpu_custom_call.1} parent=1 // pred_fallthru
      _
    // Predicated region
    $region26: #{tpu_custom_call.1} parent=1 // pred_check
      _
    $region27: #{tpu_custom_call.1} parent=1 // pred_check_branch
      %243 = sbr.rel (0) target = $region29
    $region28: #{tpu_custom_call.1} parent=1 // pred_region
      %244 = dma.done [#allocation4], 16
    $region29: #{tpu_custom_call.1} parent=1 // pred_fallthru
      _
    %245 = vsyncpa [#allocation4], 1

</llo_original>
